<compile_context>
chip_gen: v5e
topology: v5e:2x2
jax: 0.10.0
libtpu: 0.0.40
codegen_flags: <defaults>
</compile_context>

<pallas_src>
import functools
import math

import jax
import jax.numpy as jnp
from jax.experimental import pallas as pl
from jax.experimental.pallas import tpu as pltpu

LANE = 128        # lane width (last dim of a vreg)
SUBLANE = 8       # f32 sublane count (second-to-last dim)
TM_TARGET = 256   # preferred batch-tile rows: >= one full MXU pass on v6e/v7x,
                  # amortizes the ~0.35us per-grid-step overhead


def _round_up(x, m):
    return (x + m - 1) // m * m


def _fused_mlp_kernel(n_layers, x_ref, *refs):
    """refs = (w0_ref, b0_ref, ..., w_{L-1}_ref, b_{L-1}_ref, o_ref).

    One batch tile per grid step.  The layer stack is unrolled statically;
    intermediate activations `h` stay in vregs/VMEM and never hit HBM.
    Matmul operands are bf16 (MXU), accumulation + VPU epilogue (bias, ReLU)
    stay f32 (v5e has no bf16 VPU path).
    """
    o_ref = refs[-1]
    h = x_ref[...].astype(jnp.float32)
    for i in range(n_layers):
        w_ref = refs[2 * i]
        b_ref = refs[2 * i + 1]
        y = jnp.dot(h.astype(w_ref.dtype), w_ref[...],
                    preferred_element_type=jnp.float32)
        y = y + b_ref[...]              # (1, N) broadcasts over the batch tile
        h = jnp.maximum(y, 0.0)         # f32 VPU epilogue
    # TODO(synk): for very wide layers / large TM, stage `h` in an explicit
    # pltpu.VMEM scratch accumulator instead of relying on compiler spilling.
    o_ref[...] = h.astype(o_ref.dtype)


def init_feature_model_params(key, input_shape, dense_layers, dropout_rate=0.0):
    """Deterministic init mirroring nn.Linear (weights stored as (in, out))."""
    if dropout_rate > 0:
        # TODO(synk): nn.Dropout branch not implemented (module default is 0).
        raise NotImplementedError("dropout_rate > 0 is not supported by this kernel")
    params = []
    prev = input_shape
    for layer in dense_layers:
        key, kw, kb = jax.random.split(key, 3)
        bound = 1.0 / math.sqrt(prev)   # PyTorch nn.Linear default uniform bound
        w = jax.random.uniform(kw, (prev, layer), jnp.float32, -bound, bound)
        b = jax.random.uniform(kb, (layer,), jnp.float32, -bound, bound)
        params.append((w, b))
        prev = layer
    return params


def prep_params(params):
    """One-time layout prep:
      * weights cast to bf16 (MXU operands), shape (in, out);
      * biases kept f32, pre-shaped (1, N);
      * ONLY the last layer's output dim is zero-padded to a 128-lane multiple
        (lane-dense HBM store).  Contraction dims stay exact."""
    prepped = []
    n_layers = len(params)
    for i, (w, b) in enumerate(params):
        k, n = w.shape
        n_pad = _round_up(n, LANE) if i == n_layers - 1 else n
        w_p = jnp.zeros((k, n_pad), jnp.float32).at[:, :n].set(w).astype(jnp.bfloat16)
        b_p = jnp.zeros((1, n_pad), jnp.float32).at[0, :n].set(b)
        prepped.append((w_p, b_p))
    return prepped


@functools.partial(jax.jit, static_argnames=("out_dim",))
def feature_model_forward(prepped_params, x, out_dim):
    """Forward pass of FeatureModel: repeated (Linear -> ReLU), fused into one
    pallas_call with a batch grid.  Output sliced back to (batch, out_dim)."""
    M, K = x.shape
    n_layers = len(prepped_params)
    N_pad = prepped_params[-1][0].shape[1]

    # Batch tiling: TM rows per grid step; pad M up to a whole number of tiles.
    M_al = _round_up(M, SUBLANE)
    TM = min(TM_TARGET, M_al)           # multiple of 8 by construction
    M_pad = _round_up(M, TM)
    grid = (M_pad // TM,)

    x_pad = x
    if M_pad != M:
        x_pad = jnp.zeros((M_pad, K), x.dtype).at[:M, :].set(x)

    flat_inputs = [x_pad]
    in_specs = [pl.BlockSpec((TM, K), lambda i: (i, 0))]
    for w, b in prepped_params:
        flat_inputs += [w, b]
        # Full-array blocks with a constant block index -> fetched once,
        # VMEM-resident for every grid step.
        in_specs.append(pl.BlockSpec(w.shape, lambda i: (0, 0)))
        in_specs.append(pl.BlockSpec(b.shape, lambda i: (0, 0)))
    out_spec = pl.BlockSpec((TM, N_pad), lambda i: (i, 0))

    # Generation-aware VMEM budget: resident params + double-buffered x/out
    # tiles + largest intermediate activation, with headroom; capped at 64 MiB
    # (v7x physical).  v5e's default scoped limit (16 MiB) is overridden here.
    param_bytes = sum(int(w.size) * w.dtype.itemsize + int(b.size) * b.dtype.itemsize
                      for w, b in prepped_params)
    max_n = max(w.shape[1] for w, _ in prepped_params)
    act_bytes = 2 * TM * K * 4 + 2 * TM * N_pad * 4 + 2 * TM * max_n * 4
    vmem_limit = int(min(param_bytes + act_bytes + (8 << 20), 64 << 20))

    flops = 2 * M_pad * sum(w.shape[0] * w.shape[1] for w, _ in prepped_params)
    bytes_accessed = (int(x_pad.size) * x_pad.dtype.itemsize + param_bytes
                      + M_pad * N_pad * x.dtype.itemsize)

    out_pad = pl.pallas_call(
        functools.partial(_fused_mlp_kernel, n_layers),
        out_shape=jax.ShapeDtypeStruct((M_pad, N_pad), x.dtype),
        grid=grid,
        in_specs=in_specs,
        out_specs=out_spec,
        compiler_params=pltpu.CompilerParams(
            dimension_semantics=("parallel",),   # v7x: shard batch tiles over 2 TCs
            vmem_limit_bytes=vmem_limit),
        cost_estimate=pl.CostEstimate(flops=int(flops), transcendentals=0,
                                      bytes_accessed=int(bytes_accessed)),
    )(*flat_inputs)

    return out_pad[:M, :out_dim]


def _reference(params, x):
    """Pure-JAX reference with the same bf16-operand / f32-accumulate math."""
    ref = x
    for w, b in params:
        ref = jnp.maximum(
            jnp.dot(ref.astype(jnp.bfloat16), w.astype(jnp.bfloat16),
                    preferred_element_type=jnp.float32) + b, 0.0)
    return ref


if __name__ == "__main__":
    input_shape = 32
    dense_layers = [64, 64]

    key = jax.random.PRNGKey(0)
    params = init_feature_model_params(key, input_shape, dense_layers)
    prepped = prep_params(params)

    # --- small case: batch=8 (single tile, grid=(1,)) ---
    key, kx = jax.random.split(key)
    x_small = jax.random.normal(kx, (8, input_shape), jnp.float32)
    out_small = feature_model_forward(prepped, x_small, out_dim=dense_layers[-1])
    out_small = jax.block_until_ready(out_small)
    ref_small = _reference(params, x_small)
    assert out_small.shape == (8, dense_layers[-1]), out_small.shape
    assert jnp.allclose(out_small, ref_small, atol=2e-4, rtol=2e-4)

    # --- larger batch: exercises multi-step grid + batch padding/slice ---
    key, kx2 = jax.random.split(key)
    x_big = jax.random.normal(kx2, (520, input_shape), jnp.float32)
    out_big = feature_model_forward(prepped, x_big, out_dim=dense_layers[-1])
    out_big = jax.block_until_ready(out_big)
    ref_big = _reference(params, x_big)
    assert out_big.shape == (520, dense_layers[-1]), out_big.shape
    assert jnp.allclose(out_big, ref_big, atol=2e-4, rtol=2e-4)

    print("KERNEL_OK")
</pallas_src>

<mosaic_0001>
module attributes {stable_mosaic.version = 11 : i64} {
  func.func @_fused_mlp_kernel(%arg0: i32, %arg1: memref<8x32xf32, #tpu.memory_space<vmem>>, %arg2: memref<32x64xbf16, #tpu.memory_space<vmem>>, %arg3: memref<1x64xf32, #tpu.memory_space<vmem>>, %arg4: memref<64x128xbf16, #tpu.memory_space<vmem>>, %arg5: memref<1x128xf32, #tpu.memory_space<vmem>>, %arg6: memref<8x128xf32, #tpu.memory_space<vmem>>) attributes {dimension_semantics = [#tpu.dimension_semantics<parallel>], iteration_bounds = array<i64: 1>, scalar_prefetch = 0 : i64, scratch_operands = 0 : i64, tpu.core_type = #tpu.core_type<tc>, window_params = [{transform_indices = @transform_0, window_bounds = array<i64: 8, 32>}, {pipeline_mode = #tpu.pipeline_mode<synchronous>, transform_indices = @transform_1, window_bounds = array<i64: 32, 64>}, {pipeline_mode = #tpu.pipeline_mode<synchronous>, transform_indices = @transform_2, window_bounds = array<i64: 1, 64>}, {pipeline_mode = #tpu.pipeline_mode<synchronous>, transform_indices = @transform_3, window_bounds = array<i64: 64, 128>}, {pipeline_mode = #tpu.pipeline_mode<synchronous>, transform_indices = @transform_4, window_bounds = array<i64: 1, 128>}, {transform_indices = @transform_5, window_bounds = array<i64: 8, 128>}]} {
    %c0 = arith.constant 0 : index
    %c0_0 = arith.constant 0 : index
    %0 = vector.load %arg1[%c0, %c0_0] : memref<8x32xf32, #tpu.memory_space<vmem>>, vector<8x32xf32>
    %1 = arith.truncf %0 : vector<8x32xf32> to vector<8x32xbf16>
    %c0_1 = arith.constant 0 : index
    %c0_2 = arith.constant 0 : index
    %2 = vector.load %arg2[%c0_1, %c0_2] : memref<32x64xbf16, #tpu.memory_space<vmem>>, vector<32x64xbf16>
    %cst = arith.constant dense<0.000000e+00> : vector<8x64xf32>
    %3 = tpu.matmul %1, %2, %cst {dimension_numbers = #tpu.dot_dimension_numbers<[1], [0], [0], [1], [0, 0, 1, 1], [], []>} : vector<8x32xbf16>, vector<32x64xbf16>, vector<8x64xf32> -> vector<8x64xf32>
    %c0_3 = arith.constant 0 : index
    %c0_4 = arith.constant 0 : index
    %4 = vector.load %arg3[%c0_3, %c0_4] : memref<1x64xf32, #tpu.memory_space<vmem>>, vector<1x64xf32>
    %5 = vector.broadcast %4 : vector<1x64xf32> to vector<8x64xf32>
    %6 = arith.addf %3, %5 : vector<8x64xf32>
    %cst_5 = arith.constant 0.000000e+00 : f32
    %7 = vector.broadcast %cst_5 : f32 to vector<8x64xf32>
    %8 = arith.maximumf %6, %7 : vector<8x64xf32>
    %9 = arith.truncf %8 : vector<8x64xf32> to vector<8x64xbf16>
    %c0_6 = arith.constant 0 : index
    %c0_7 = arith.constant 0 : index
    %10 = vector.load %arg4[%c0_6, %c0_7] : memref<64x128xbf16, #tpu.memory_space<vmem>>, vector<64x128xbf16>
    %cst_8 = arith.constant dense<0.000000e+00> : vector<8x128xf32>
    %11 = tpu.matmul %9, %10, %cst_8 {dimension_numbers = #tpu.dot_dimension_numbers<[1], [0], [0], [1], [0, 0, 1, 1], [], []>} : vector<8x64xbf16>, vector<64x128xbf16>, vector<8x128xf32> -> vector<8x128xf32>
    %c0_9 = arith.constant 0 : index
    %c0_10 = arith.constant 0 : index
    %12 = vector.load %arg5[%c0_9, %c0_10] : memref<1x128xf32, #tpu.memory_space<vmem>>, vector<1x128xf32>
    %13 = vector.broadcast %12 : vector<1x128xf32> to vector<8x128xf32>
    %14 = arith.addf %11, %13 : vector<8x128xf32>
    %cst_11 = arith.constant 0.000000e+00 : f32
    %15 = vector.broadcast %cst_11 : f32 to vector<8x128xf32>
    %16 = arith.maximumf %14, %15 : vector<8x128xf32>
    %c0_12 = arith.constant 0 : index
    %c0_13 = arith.constant 0 : index
    %17 = vector.load %arg6[%c0_12, %c0_13] : memref<8x128xf32, #tpu.memory_space<vmem>>, vector<8x128xf32>
    tpu.vector_store %arg6[%c0_12, %c0_13], %16 {strides = array<i32>} : memref<8x128xf32, #tpu.memory_space<vmem>>, vector<8x128xf32>,
    return
  }
  func.func @transform_0(%arg0: i32) -> (i32, i32) {
    %c0_i32 = arith.constant 0 : i32
    %c0_i32_0 = arith.constant 0 : i32
    return %arg0, %c0_i32 : i32, i32
  }
  func.func @transform_1(%arg0: i32) -> (i32, i32) {
    %c0_i32 = arith.constant 0 : i32
    %c0_i32_0 = arith.constant 0 : i32
    %c0_i32_1 = arith.constant 0 : i32
    return %c0_i32, %c0_i32_0 : i32, i32
  }
  func.func @transform_2(%arg0: i32) -> (i32, i32) {
    %c0_i32 = arith.constant 0 : i32
    %c0_i32_0 = arith.constant 0 : i32
    %c0_i32_1 = arith.constant 0 : i32
    return %c0_i32, %c0_i32_0 : i32, i32
  }
  func.func @transform_3(%arg0: i32) -> (i32, i32) {
    %c0_i32 = arith.constant 0 : i32
    %c0_i32_0 = arith.constant 0 : i32
    %c0_i32_1 = arith.constant 0 : i32
    return %c0_i32, %c0_i32_0 : i32, i32
  }
  func.func @transform_4(%arg0: i32) -> (i32, i32) {
    %c0_i32 = arith.constant 0 : i32
    %c0_i32_0 = arith.constant 0 : i32
    %c0_i32_1 = arith.constant 0 : i32
    return %c0_i32, %c0_i32_0 : i32, i32
  }
  func.func @transform_5(%arg0: i32) -> (i32, i32) {
    %c0_i32 = arith.constant 0 : i32
    %c0_i32_0 = arith.constant 0 : i32
    return %arg0, %c0_i32 : i32, i32
  }
}

</mosaic_0001>

<llo_original>
// kernel: feature_model_forward.1
$region0: #{feature_model_forward.1}
  #allocation0 [shape = 'u32[]', space=smem, size = 0x4, offset = 0x4, fixed_abs, tag = 'smem constant byte address 0x4 - core index']
  #allocation1 [shape = 'u32[72,128]{1,0:T(1,128)}', space=vmem, size = 0x9000, scoped, tag = 'internal scratch']
  %s0 = inlined_call_operand.hbm [shape: f32[8,32], index: 0, kind: input, shape index: {}]
  %s1 = inlined_call_operand.hbm [shape: bf16[32,64], index: 1, kind: input, shape index: {}]
  %s2 = inlined_call_operand.hbm [shape: f32[1,64], index: 2, kind: input, shape index: {}]
  %s3 = inlined_call_operand.hbm [shape: bf16[64,128], index: 3, kind: input, shape index: {}]
  %s4 = inlined_call_operand.vmem [shape: f32[1,128], index: 4, kind: input, shape index: {}]
  %s5 = inlined_call_operand.hbm [shape: f32[8,128], index: 5, kind: output, shape index: {}]
  %s6 = sld [smem:[#allocation0]]
  $region46: #{feature_model_forward.1} parent=0
    _
  %s8 = ssub.s32 1, %s6
  %s9 = scalar_select 0, %s8, %s6
  $region1: #{feature_model_forward.1} parent=0
    #allocation2 [shape = 'u8[4096]{0}', space=vmem, size = 0x1000, scoped, tag = 'input window, operand 0, single buffered']
    #allocation3 [shape = 's32[1]{0}', space=sflag, size = 0x4, scoped, tag = 'scoped memory for feature_model_forward.1']
    #allocation4 [shape = 's32[1]{0}', space=sflag, size = 0x4, scoped, tag = 'scoped memory for feature_model_forward.1']
    #allocation5 [shape = 'u8[8192]{0}', space=vmem, size = 0x2000, scoped, tag = 'input window, operand 1, single buffered']
    #allocation6 [shape = 's32[1]{0}', space=sflag, size = 0x4, scoped, tag = 'scoped memory for feature_model_forward.1']
    #allocation7 [shape = 'u8[512]{0}', space=vmem, size = 0x400, scoped, tag = 'input window, operand 2, single buffered']
    #allocation8 [shape = 'u8[16384]{0}', space=vmem, size = 0x4000, scoped, tag = 'input window, operand 3, single buffered']
    #allocation9 [shape = 's32[1]{0}', space=sflag, size = 0x4, scoped, tag = 'scoped memory for feature_model_forward.1']
    #allocation10 [shape = 'u8[4096]{0}', space=vmem, size = 0x1000, scoped, tag = 'output window, operand 0, single buffered']
    %10 = vsyncpa [#allocation3], 0
    %11 = vsyncpa [#allocation6], 0
    %12 = vsyncpa [#allocation9], 0
    %13 = vsyncpa [#allocation4], 0
    // Predicated region
    $region2: #{feature_model_forward.1} parent=1 // pred_check
      _
    $region3: #{feature_model_forward.1} parent=1 // pred_check_branch
      %15 = sbr.rel (0) target = $region5
    $region4: #{feature_model_forward.1} parent=1 // pred_region
      %17 = vsyncadd [#allocation3], 0
      %s19 = sshll.u32 %s0, 4
      %s20 = int_to_ptr.hbm [resolvable:$true] %s19
      %s21 = sshll.u32 [#allocation2], 4
      %s22 = int_to_ptr.vmem [resolvable:$true] %s21
      %24 = dma.hbm_to_vmem [thread:$0]  %s20, 128, %s22, [#allocation3]
    $region5: #{feature_model_forward.1} parent=1 // pred_fallthru
      _
    // Predicated region
    $region6: #{feature_model_forward.1} parent=1 // pred_check
      _
    $region7: #{feature_model_forward.1} parent=1 // pred_check_branch
      %26 = sbr.rel (0) target = $region9
    $region8: #{feature_model_forward.1} parent=1 // pred_region
      %28 = vsyncadd [#allocation6], 0
      %s29 = sshll.u32 %s1, 4
      %s30 = int_to_ptr.hbm [resolvable:$true] %s29
      %s31 = sshll.u32 [#allocation5], 4
      %s32 = int_to_ptr.vmem [resolvable:$true] %s31
      %37 = dma.hbm_to_vmem [thread:$0]  %s30, 256, %s32, [#allocation6], 64, 64, 4
    $region9: #{feature_model_forward.1} parent=1 // pred_fallthru
      _
    // Predicated region
    $region10: #{feature_model_forward.1} parent=1 // pred_check
      _
    $region11: #{feature_model_forward.1} parent=1 // pred_check_branch
      %39 = sbr.rel (0) target = $region13
    $region12: #{feature_model_forward.1} parent=1 // pred_region
      %41 = vsyncadd [#allocation6], 0
      %s43 = sshll.u32 %s2, 4
      %s44 = int_to_ptr.hbm [resolvable:$true] %s43
      %s45 = sshll.u32 [#allocation7], 4
      %s46 = int_to_ptr.vmem [resolvable:$true] %s45
      %48 = dma.hbm_to_vmem [thread:$0]  %s44, 16, %s46, [#allocation6]
    $region13: #{feature_model_forward.1} parent=1 // pred_fallthru
      _
    // Predicated region
    $region14: #{feature_model_forward.1} parent=1 // pred_check
      _
    $region15: #{feature_model_forward.1} parent=1 // pred_check_branch
      %50 = sbr.rel (0) target = $region17
    $region16: #{feature_model_forward.1} parent=1 // pred_region
      %52 = vsyncadd [#allocation9], 0
      %s53 = sshll.u32 %s3, 4
      %s54 = int_to_ptr.hbm [resolvable:$true] %s53
      %s55 = sshll.u32 [#allocation8], 4
      %s56 = int_to_ptr.vmem [resolvable:$true] %s55
      %61 = dma.hbm_to_vmem [thread:$0]  %s54, 512, %s56, [#allocation9], 64, 64, 4
    $region17: #{feature_model_forward.1} parent=1 // pred_fallthru
      _
    // Predicated region
    $region18: #{feature_model_forward.1} parent=1 // pred_check
      _
    $region19: #{feature_model_forward.1} parent=1 // pred_check_branch
      %63 = sbr.rel (0) target = $region21
    $region20: #{feature_model_forward.1} parent=1 // pred_region
      _
    $region21: #{feature_model_forward.1} parent=1 // pred_fallthru
      _
    // Predicated region
    $region22: #{feature_model_forward.1} parent=1 // pred_check
      _
    $region23: #{feature_model_forward.1} parent=1 // pred_check_branch
      %65 = sbr.rel (0) target = $region25
    $region24: #{feature_model_forward.1} parent=1 // pred_region
      %67 = dma.done [#allocation3], 128
    $region25: #{feature_model_forward.1} parent=1 // pred_fallthru
      _
    // Predicated region
    $region26: #{feature_model_forward.1} parent=1 // pred_check
      _
    $region27: #{feature_model_forward.1} parent=1 // pred_check_branch
      %69 = sbr.rel (0) target = $region29
    $region28: #{feature_model_forward.1} parent=1 // pred_region
      %71 = dma.done [#allocation6], 256
    $region29: #{feature_model_forward.1} parent=1 // pred_fallthru
      _
    // Predicated region
    $region30: #{feature_model_forward.1} parent=1 // pred_check
      _
    $region31: #{feature_model_forward.1} parent=1 // pred_check_branch
      %73 = sbr.rel (0) target = $region33
    $region32: #{feature_model_forward.1} parent=1 // pred_region
      %75 = dma.done [#allocation6], 16
    $region33: #{feature_model_forward.1} parent=1 // pred_fallthru
      _
    // Predicated region
    $region34: #{feature_model_forward.1} parent=1 // pred_check
      _
    $region35: #{feature_model_forward.1} parent=1 // pred_check_branch
      %77 = sbr.rel (0) target = $region37
    $region36: #{feature_model_forward.1} parent=1 // pred_region
      %79 = dma.done [#allocation9], 512
    $region37: #{feature_model_forward.1} parent=1 // pred_fallthru
      _
    %v81 = vld [vmem:[#allocation2] sm:$0xff]
    %v82 = vpack.c.bf16 %v81, %v81
    %v83 = vld [vmem:[#allocation5] sm:$0xf]
    %v84 = vld [vmem:[#allocation5 + $0x4] sm:$0xf]
    %v85 = vld [vmem:[#allocation5 + $0x8] sm:$0xf]
    %v86 = vld [vmem:[#allocation5 + $0xc] sm:$0xf]
    %v87 = vld [vmem:[#allocation7] sm:$0x1]
    %v89 = vperm.slane %v87, 0
    %v95 = vunpack.c.l.b16 %v83
    %v96 = vunpack.c.l.b16 %v84
    %v97 = vunpack.c.l.b16 %v85
    %v98 = vunpack.c.l.b16 %v86
    %v99 = vpack.c.b16 %v96, %v95
    %v100 = vpack.c.b16 %v98, %v97
    %vm103 = vcmask 261120
    %v105 = vsel %vm103, %v82, 0
    %107 = vmatpush.bf16.msra.mxu0 0
    %108 = vmatpush.bf16.msra.mxu0 0
    %109 = vmatpush.bf16.msra.mxu0 0
    %110 = vmatpush.bf16.msra.mxu0 0
    %111 = vmatpush.bf16.msra.mxu0 0
    %112 = vmatpush.bf16.msra.mxu0 0
    %113 = vmatpush.bf16.msra.mxu0 %v100
    %114 = vmatpush.bf16.msra.mxu0 %v99
    %115 = vmatmul.bf16.gmra.mxu0 %v105
    %v116 = vpop.f32.mrf.mxu0
    %v117 = vadd.f32 %v89, %v116
    %v118 = vpop.f32.mrf.mxu0
    %119 = vdwg.mxu0
    %v120 = vmax.f32 %v117, 0.0
    %v121 = vpack.c.bf16 %v120, %v120
    %v122 = vld [vmem:[#allocation8] sm:$0xf]
    %v123 = vld [vmem:[#allocation8 + $0x4] sm:$0xf]
    %v124 = vld [vmem:[#allocation8 + $0x8] sm:$0xf]
    %v125 = vld [vmem:[#allocation8 + $0xc] sm:$0xf]
    %v126 = vld [vmem:[#allocation8 + $0x10] sm:$0xf]
    %v127 = vld [vmem:[#allocation8 + $0x14] sm:$0xf]
    %v128 = vld [vmem:[#allocation8 + $0x18] sm:$0xf]
    %v129 = vld [vmem:[#allocation8 + $0x1c] sm:$0xf]
    %v130 = vld [vmem:[%s4] sm:$0x1]
    %v132 = vperm.slane %v130, 0
    %v142 = vunpack.c.l.b16 %v122
    %v143 = vunpack.c.l.b16 %v123
    %v144 = vunpack.c.l.b16 %v124
    %v145 = vunpack.c.l.b16 %v125
    %v146 = vunpack.c.l.b16 %v126
    %v147 = vunpack.c.l.b16 %v127
    %v148 = vunpack.c.l.b16 %v128
    %v149 = vunpack.c.l.b16 %v129
    %v150 = vpack.c.b16 %v143, %v142
    %v151 = vpack.c.b16 %v145, %v144
    %v152 = vpack.c.b16 %v147, %v146
    %v153 = vpack.c.b16 %v149, %v148
    %vm158 = vcmask 523264
    %v160 = vsel %vm158, %v121, 0
    %162 = vmatpush.bf16.msra.mxu0 0
    %163 = vmatpush.bf16.msra.mxu0 0
    %164 = vmatpush.bf16.msra.mxu0 0
    %165 = vmatpush.bf16.msra.mxu0 0
    %166 = vmatpush.bf16.msra.mxu0 %v153
    %167 = vmatpush.bf16.msra.mxu0 %v152
    %168 = vmatpush.bf16.msra.mxu0 %v151
    %169 = vmatpush.bf16.msra.mxu0 %v150
    %170 = vmatmul.bf16.gmra.mxu0 %v160
    %v171 = vpop.f32.mrf.mxu0
    %v172 = vadd.f32 %v132, %v171
    %v173 = vpop.f32.mrf.mxu0
    %174 = vdwg.mxu0
    %v175 = vmax.f32 %v172, 0.0
    %176 = vst [vmem:[#allocation10] sm:$0xff] %v175
    // Predicated region
    $region38: #{feature_model_forward.1} parent=1 // pred_check
      _
    $region39: #{feature_model_forward.1} parent=1 // pred_check_branch
      %178 = sbr.rel (0) target = $region41
    $region40: #{feature_model_forward.1} parent=1 // pred_region
      %180 = vsyncadd [#allocation4], 0
      %s182 = sshll.u32 [#allocation10], 4
      %s183 = int_to_ptr.vmem [resolvable:$true] %s182
      %s184 = sshll.u32 %s5, 4
      %s185 = int_to_ptr.hbm [resolvable:$true] %s184
      %187 = dma.vmem_to_hbm [thread:$0]  %s183, 128, %s185, [#allocation4]
    $region41: #{feature_model_forward.1} parent=1 // pred_fallthru
      _
    // Predicated region
    $region42: #{feature_model_forward.1} parent=1 // pred_check
      _
    $region43: #{feature_model_forward.1} parent=1 // pred_check_branch
      %189 = sbr.rel (0) target = $region45
    $region44: #{feature_model_forward.1} parent=1 // pred_region
      %191 = dma.done [#allocation4], 128
    $region45: #{feature_model_forward.1} parent=1 // pred_fallthru
      _
    %192 = vsyncpa [#allocation3], 1
    %193 = vsyncpa [#allocation6], 1
    %194 = vsyncpa [#allocation9], 1
    %195 = vsyncpa [#allocation4], 1

</llo_original>
